<compile_context>
chip_gen: v6e
topology: v6e:2x2x1
jax: 0.10.0
libtpu: 0.0.40
codegen_flags: <defaults>
</compile_context>

<pallas_src>
import jax
import jax.numpy as jnp
from jax.experimental import pallas as pl
from jax.experimental.pallas import tpu as pltpu

IMAGENET_MEAN = [0.485, 0.456, 0.406]
IMAGENET_STD = [0.229, 0.224, 0.225]

_LANES = 128  # pad output (classes) axis to a multiple of this for lane-dense stores


# ----------------------------------------------------------------------------
# Fused kernel: logits = x_flat @ W' + b'   (normalization pre-folded into W', b')
# ----------------------------------------------------------------------------
def _fused_linear_kernel(x_ref, w_ref, b_ref, o_ref):
    # bf16 operands, f32 MXU accumulation; f32 bias added on the accumulator.
    acc = jnp.dot(x_ref[...], w_ref[...], preferred_element_type=jnp.float32)
    o_ref[...] = (acc + b_ref[...]).astype(o_ref.dtype)


def fused_linear_pallas(x_flat, w, b, *, tm=256):
    """x_flat: (N, D) bf16; w: (D, Kp) bf16; b: (1, Kp) f32. Kp % 128 == 0.

    Returns (N, Kp) f32 logits. Small N -> single full-array block (no padding,
    legal because block == array dims). Large N (multiple of tm) -> grid over M
    with W/b resident and the M axis marked "parallel" (megacore / pipelining).
    """
    n, d = x_flat.shape
    k = w.shape[1]

    cost = pl.CostEstimate(
        flops=2 * n * d * k,
        transcendentals=0,
        bytes_accessed=n * d * 2 + d * k * 2 + k * 4 + n * k * 4,
    )

    if n >= 2 * tm and n % tm == 0:
        # Tiled-M path: W/b stay resident, x/out blocks stream; default double-buffering.
        grid = (n // tm,)
        in_specs = [
            pl.BlockSpec((tm, d), lambda i: (i, 0)),
            pl.BlockSpec((d, k), lambda i: (0, 0)),
            pl.BlockSpec((1, k), lambda i: (0, 0)),
        ]
        out_specs = pl.BlockSpec((tm, k), lambda i: (i, 0))
        semantics = ("parallel",)
        # TODO(synk): if D/K scale to real backbone sizes, add a K-reduction grid axis
        # with a VMEM f32 accumulator + pl.when init/finalize and re-budget tiles for
        # v7x's 64 MiB VMEM.
    else:
        # Single full-array block: legal for any (n, d)/(n, k) since block == array dims.
        grid = (1,)
        in_specs = [
            pl.BlockSpec((n, d), lambda i: (0, 0)),
            pl.BlockSpec((d, k), lambda i: (0, 0)),
            pl.BlockSpec((1, k), lambda i: (0, 0)),
        ]
        out_specs = pl.BlockSpec((n, k), lambda i: (0, 0))
        semantics = ("arbitrary",)

    return pl.pallas_call(
        _fused_linear_kernel,
        out_shape=jax.ShapeDtypeStruct((n, k), jnp.float32),
        grid=grid,
        in_specs=in_specs,
        out_specs=out_specs,
        compiler_params=pltpu.CompilerParams(dimension_semantics=semantics),
        cost_estimate=cost,
    )(x_flat, w, b)


# ----------------------------------------------------------------------------
# ImagenetModel equivalent
# ----------------------------------------------------------------------------
class ImagenetModelPallas:
    """forward(x) = existing_model(normalize(x))[:, :num_classes]

    existing_model is a deterministic synthetic backbone: flatten + linear.
    The normalization (x - mean)/std is affine, so it is folded exactly (in f32) into
    the linear layer:  w' = diag(1/std_flat) @ w,   b' = b - (mean/std)_flat @ w,
    then w' is cast to bf16 for the MXU-native matmul (bias stays f32).
    """

    def __init__(self, key, image_shape=(3, 16, 16), model_classes=16, num_classes=10):
        c, h, w = image_shape
        assert c == len(IMAGENET_MEAN)
        self.num_classes = num_classes
        self.model_classes = model_classes

        # Original (unfused) f32 parameters, kept for the reference checks.
        self.mean = jnp.asarray(IMAGENET_MEAN, jnp.float32).reshape(1, c, 1, 1)
        self.std = jnp.asarray(IMAGENET_STD, jnp.float32).reshape(1, c, 1, 1)
        d = c * h * w
        k_w, k_b = jax.random.split(key)
        self.w = jax.random.normal(k_w, (d, model_classes), jnp.float32) * 0.02
        self.b = jax.random.normal(k_b, (model_classes,), jnp.float32) * 0.02

        # --- Fold normalization into the linear head (host-side, exact, f32) ---
        inv_std = 1.0 / jnp.asarray(IMAGENET_STD, jnp.float32)                 # (C,)
        mean_arr = jnp.asarray(IMAGENET_MEAN, jnp.float32)                     # (C,)
        scale_flat = jnp.broadcast_to(inv_std.reshape(c, 1, 1), (c, h, w)).reshape(d)
        shift_flat = jnp.broadcast_to((mean_arr * inv_std).reshape(c, 1, 1), (c, h, w)).reshape(d)
        w_fold = self.w * scale_flat[:, None]                                  # (D, K)  f32
        b_fold = self.b - shift_flat @ self.w                                  # (K,)    f32

        # --- Pad classes axis to a multiple of 128 lanes (unmasked, lane-dense stores) ---
        k_pad = ((model_classes + _LANES - 1) // _LANES) * _LANES
        self.k_pad = k_pad
        w_fold_pad = jnp.zeros((d, k_pad), jnp.float32).at[:, :model_classes].set(w_fold)
        b_fold_pad = jnp.zeros((1, k_pad), jnp.float32).at[:, :model_classes].set(b_fold)

        # bf16 weights for the MXU; bias stays f32 (added on the f32 accumulator).
        self.w_fold = w_fold_pad.astype(jnp.bfloat16)
        self.b_fold = b_fold_pad

    def __call__(self, x):
        n = x.shape[0]
        x_flat = x.reshape(n, -1).astype(jnp.bfloat16)     # glue reshape + bf16 cast (plain JAX)
        logits_pad = fused_linear_pallas(x_flat, self.w_fold, self.b_fold)
        return logits_pad[:, : self.num_classes]           # [:, :num_classes]


# ----------------------------------------------------------------------------
# References
# ----------------------------------------------------------------------------
def _reference_forward_f32(model, x):
    """Original module semantics in full f32 (normalize -> flatten -> linear -> slice)."""
    x_norm = (x - model.mean) / model.std
    logits = x_norm.reshape(x.shape[0], -1) @ model.w + model.b
    return logits[:, : model.num_classes]


def _reference_forward_bf16(model, x):
    """Same folded bf16 operand path the kernel uses (f32 accumulation)."""
    x_flat = x.reshape(x.shape[0], -1).astype(jnp.bfloat16)
    logits = (
        jnp.dot(x_flat, model.w_fold, preferred_element_type=jnp.float32) + model.b_fold
    )
    return logits[:, : model.num_classes]


if __name__ == "__main__":
    key = jax.random.PRNGKey(0)
    k_x, k_p = jax.random.split(key)
    x = jax.random.uniform(k_x, (2, 3, 16, 16), jnp.float32)  # NCHW, values in [0,1) like images

    model = ImagenetModelPallas(k_p, image_shape=(3, 16, 16), model_classes=16, num_classes=10)

    out = model(x)
    out = jax.block_until_ready(out)
    assert out.shape == (2, 10), out.shape

    # Tight check against the bf16-matched reference (same operand precision as kernel).
    ref_bf16 = _reference_forward_bf16(model, x)
    assert jnp.allclose(out, ref_bf16, atol=1e-4, rtol=1e-3), "mismatch vs bf16-matched reference"

    # Loose check against the original full-f32 module semantics (bf16 rounding tolerance).
    ref_f32 = _reference_forward_f32(model, x)
    assert jnp.allclose(out, ref_f32, atol=3e-2, rtol=3e-2), "mismatch vs f32 reference"

    print("KERNEL_OK")
</pallas_src>

<mosaic_0001>
module attributes {stable_mosaic.version = 11 : i64} {
  func.func @_fused_linear_kernel(%arg0: i32, %arg1: memref<2x768xbf16, #tpu.memory_space<vmem>>, %arg2: memref<768x128xbf16, #tpu.memory_space<vmem>>, %arg3: memref<1x128xf32, #tpu.memory_space<vmem>>, %arg4: memref<2x128xf32, #tpu.memory_space<vmem>>) attributes {dimension_semantics = [#tpu.dimension_semantics<arbitrary>], iteration_bounds = array<i64: 1>, scalar_prefetch = 0 : i64, scratch_operands = 0 : i64, tpu.core_type = #tpu.core_type<tc>, window_params = [{pipeline_mode = #tpu.pipeline_mode<synchronous>, transform_indices = @transform_0, window_bounds = array<i64: 2, 768>}, {pipeline_mode = #tpu.pipeline_mode<synchronous>, transform_indices = @transform_1, window_bounds = array<i64: 768, 128>}, {pipeline_mode = #tpu.pipeline_mode<synchronous>, transform_indices = @transform_2, window_bounds = array<i64: 1, 128>}, {pipeline_mode = #tpu.pipeline_mode<synchronous>, transform_indices = @transform_3, window_bounds = array<i64: 2, 128>}]} {
    %c0 = arith.constant 0 : index
    %c0_0 = arith.constant 0 : index
    %0 = vector.load %arg1[%c0, %c0_0] : memref<2x768xbf16, #tpu.memory_space<vmem>>, vector<2x768xbf16>
    %c0_1 = arith.constant 0 : index
    %c0_2 = arith.constant 0 : index
    %1 = vector.load %arg2[%c0_1, %c0_2] : memref<768x128xbf16, #tpu.memory_space<vmem>>, vector<768x128xbf16>
    %cst = arith.constant dense<0.000000e+00> : vector<2x128xf32>
    %2 = tpu.matmul %0, %1, %cst {dimension_numbers = #tpu.dot_dimension_numbers<[1], [0], [0], [1], [0, 0, 1, 1], [], []>} : vector<2x768xbf16>, vector<768x128xbf16>, vector<2x128xf32> -> vector<2x128xf32>
    %c0_3 = arith.constant 0 : index
    %c0_4 = arith.constant 0 : index
    %3 = vector.load %arg3[%c0_3, %c0_4] : memref<1x128xf32, #tpu.memory_space<vmem>>, vector<1x128xf32>
    %4 = vector.broadcast %3 : vector<1x128xf32> to vector<2x128xf32>
    %5 = arith.addf %2, %4 : vector<2x128xf32>
    %c0_5 = arith.constant 0 : index
    %c0_6 = arith.constant 0 : index
    %6 = vector.load %arg4[%c0_5, %c0_6] : memref<2x128xf32, #tpu.memory_space<vmem>>, vector<2x128xf32>
    tpu.vector_store %arg4[%c0_5, %c0_6], %5 {strides = array<i32>} : memref<2x128xf32, #tpu.memory_space<vmem>>, vector<2x128xf32>,
    return
  }
  func.func @transform_0(%arg0: i32) -> (i32, i32) {
    %c0_i32 = arith.constant 0 : i32
    %c0_i32_0 = arith.constant 0 : i32
    %c0_i32_1 = arith.constant 0 : i32
    return %c0_i32, %c0_i32_0 : i32, i32
  }
  func.func @transform_1(%arg0: i32) -> (i32, i32) {
    %c0_i32 = arith.constant 0 : i32
    %c0_i32_0 = arith.constant 0 : i32
    %c0_i32_1 = arith.constant 0 : i32
    return %c0_i32, %c0_i32_0 : i32, i32
  }
  func.func @transform_2(%arg0: i32) -> (i32, i32) {
    %c0_i32 = arith.constant 0 : i32
    %c0_i32_0 = arith.constant 0 : i32
    %c0_i32_1 = arith.constant 0 : i32
    return %c0_i32, %c0_i32_0 : i32, i32
  }
  func.func @transform_3(%arg0: i32) -> (i32, i32) {
    %c0_i32 = arith.constant 0 : i32
    %c0_i32_0 = arith.constant 0 : i32
    %c0_i32_1 = arith.constant 0 : i32
    return %c0_i32, %c0_i32_0 : i32, i32
  }
}

</mosaic_0001>

<llo_original>
// kernel: tpu_custom_call.1
$region0: #{tpu_custom_call.1}
  #allocation0 [shape = 'u32[]', space=smem, size = 0x4, offset = 0x4, fixed_abs, tag = 'smem constant byte address 0x4 - core index']
  #allocation1 [shape = 'u32[144,128]{1,0:T(1,128)}', space=vmem, size = 0x12000, scoped, tag = 'internal scratch']
  %s0 = inlined_call_operand.hbm [shape: bf16[2,768], index: 0, kind: input, shape index: {}]
  %s1 = inlined_call_operand.hbm [shape: bf16[768,128], index: 1, kind: input, shape index: {}]
  %s2 = inlined_call_operand.vmem [shape: f32[1,128], index: 2, kind: input, shape index: {}]
  %s3 = inlined_call_operand.hbm [shape: f32[2,128], index: 3, kind: output, shape index: {}]
  %s4 = sld [smem:[#allocation0]]
  $region30: #{tpu_custom_call.1} parent=0
    _
  %s6 = ssub.s32 1, %s4
  %s7 = scalar_select 0, %s6, %s4
  $region1: #{tpu_custom_call.1} parent=0
    #allocation2 [shape = 'u8[3072]{0}', space=vmem, size = 0xc00, scoped, tag = 'input window, operand 0, single buffered']
    #allocation3 [shape = 's32[1]{0}', space=sflag, size = 0x4, scoped, tag = 'scoped memory for tpu_custom_call.1']
    #allocation4 [shape = 's32[1]{0}', space=sflag, size = 0x4, scoped, tag = 'scoped memory for tpu_custom_call.1']
    #allocation5 [shape = 'u8[196608]{0}', space=vmem, size = 0x30000, scoped, tag = 'input window, operand 1, single buffered']
    #allocation6 [shape = 's32[1]{0}', space=sflag, size = 0x4, scoped, tag = 'scoped memory for tpu_custom_call.1']
    #allocation7 [shape = 'u8[1024]{0}', space=vmem, size = 0x400, scoped, tag = 'output window, operand 0, single buffered']
    %8 = vsyncpa [#allocation3], 0
    %9 = vsyncpa [#allocation6], 0
    %10 = vsyncpa [#allocation4], 0
    // Predicated region
    $region2: #{tpu_custom_call.1} parent=1 // pred_check
      _
    $region3: #{tpu_custom_call.1} parent=1 // pred_check_branch
      %12 = sbr.rel (0) target = $region5
    $region4: #{tpu_custom_call.1} parent=1 // pred_region
      %s14 = ssub.s32 96, 96
      %15 = vsyncadd [#allocation3], %s14
      %s17 = sshll.u32 [#allocation2], 4
      %s18 = int_to_ptr.vmem [resolvable:$true] %s17
      %20 = dma.hbm_to_vmem [thread:$0]  %s0, 96, %s18, [#allocation3]
    $region5: #{tpu_custom_call.1} parent=1 // pred_fallthru
      _
    // Predicated region
    $region6: #{tpu_custom_call.1} parent=1 // pred_check
      _
    $region7: #{tpu_custom_call.1} parent=1 // pred_check_branch
      %22 = sbr.rel (0) target = $region9
    $region8: #{tpu_custom_call.1} parent=1 // pred_region
      %s24 = ssub.s32 6144, 6144
      %25 = vsyncadd [#allocation6], %s24
      %s26 = sshll.u32 [#allocation5], 4
      %s27 = int_to_ptr.vmem [resolvable:$true] %s26
      %32 = dma.hbm_to_vmem [thread:$0]  %s1, 6144, %s27, [#allocation6], 64, 64, 4
    $region9: #{tpu_custom_call.1} parent=1 // pred_fallthru
      _
    // Predicated region
    $region10: #{tpu_custom_call.1} parent=1 // pred_check
      _
    $region11: #{tpu_custom_call.1} parent=1 // pred_check_branch
      %34 = sbr.rel (0) target = $region13
    $region12: #{tpu_custom_call.1} parent=1 // pred_region
      _
    $region13: #{tpu_custom_call.1} parent=1 // pred_fallthru
      _
    // Predicated region
    $region14: #{tpu_custom_call.1} parent=1 // pred_check
      _
    $region15: #{tpu_custom_call.1} parent=1 // pred_check_branch
      %36 = sbr.rel (0) target = $region17
    $region16: #{tpu_custom_call.1} parent=1 // pred_region
      %37 = dma.done [#allocation3], 96
    $region17: #{tpu_custom_call.1} parent=1 // pred_fallthru
      _
    // Predicated region
    $region18: #{tpu_custom_call.1} parent=1 // pred_check
      _
    $region19: #{tpu_custom_call.1} parent=1 // pred_check_branch
      %39 = sbr.rel (0) target = $region21
    $region20: #{tpu_custom_call.1} parent=1 // pred_region
      %40 = dma.done [#allocation6], 6144
    $region21: #{tpu_custom_call.1} parent=1 // pred_fallthru
      _
    %v42 = vld [vmem:[#allocation2] sm:$0x3f]
    %v43 = vld [vmem:[#allocation5] sm:$0xf]
    %v44 = vld [vmem:[#allocation5 + $0x4] sm:$0xf]
    %v45 = vld [vmem:[#allocation5 + $0x8] sm:$0xf]
    %v46 = vld [vmem:[#allocation5 + $0xc] sm:$0xf]
    %v47 = vld [vmem:[#allocation5 + $0x10] sm:$0xf]
    %v48 = vld [vmem:[#allocation5 + $0x14] sm:$0xf]
    %v49 = vld [vmem:[#allocation5 + $0x18] sm:$0xf]
    %v50 = vld [vmem:[#allocation5 + $0x1c] sm:$0xf]
    %v51 = vld [vmem:[#allocation5 + $0x20] sm:$0xf]
    %v52 = vld [vmem:[#allocation5 + $0x24] sm:$0xf]
    %v53 = vld [vmem:[#allocation5 + $0x28] sm:$0xf]
    %v54 = vld [vmem:[#allocation5 + $0x2c] sm:$0xf]
    %v55 = vld [vmem:[#allocation5 + $0x30] sm:$0xf]
    %v56 = vld [vmem:[#allocation5 + $0x34] sm:$0xf]
    %v57 = vld [vmem:[#allocation5 + $0x38] sm:$0xf]
    %v58 = vld [vmem:[#allocation5 + $0x3c] sm:$0xf]
    %v59 = vld [vmem:[#allocation5 + $0x40] sm:$0xf]
    %v60 = vld [vmem:[#allocation5 + $0x44] sm:$0xf]
    %v61 = vld [vmem:[#allocation5 + $0x48] sm:$0xf]
    %v62 = vld [vmem:[#allocation5 + $0x4c] sm:$0xf]
    %v63 = vld [vmem:[#allocation5 + $0x50] sm:$0xf]
    %v64 = vld [vmem:[#allocation5 + $0x54] sm:$0xf]
    %v65 = vld [vmem:[#allocation5 + $0x58] sm:$0xf]
    %v66 = vld [vmem:[#allocation5 + $0x5c] sm:$0xf]
    %v67 = vld [vmem:[#allocation5 + $0x60] sm:$0xf]
    %v68 = vld [vmem:[#allocation5 + $0x64] sm:$0xf]
    %v69 = vld [vmem:[#allocation5 + $0x68] sm:$0xf]
    %v70 = vld [vmem:[#allocation5 + $0x6c] sm:$0xf]
    %v71 = vld [vmem:[#allocation5 + $0x70] sm:$0xf]
    %v72 = vld [vmem:[#allocation5 + $0x74] sm:$0xf]
    %v73 = vld [vmem:[#allocation5 + $0x78] sm:$0xf]
    %v74 = vld [vmem:[#allocation5 + $0x7c] sm:$0xf]
    %v75 = vld [vmem:[#allocation5 + $0x80] sm:$0xf]
    %v76 = vld [vmem:[#allocation5 + $0x84] sm:$0xf]
    %v77 = vld [vmem:[#allocation5 + $0x88] sm:$0xf]
    %v78 = vld [vmem:[#allocation5 + $0x8c] sm:$0xf]
    %v79 = vld [vmem:[#allocation5 + $0x90] sm:$0xf]
    %v80 = vld [vmem:[#allocation5 + $0x94] sm:$0xf]
    %v81 = vld [vmem:[#allocation5 + $0x98] sm:$0xf]
    %v82 = vld [vmem:[#allocation5 + $0x9c] sm:$0xf]
    %v83 = vld [vmem:[#allocation5 + $0xa0] sm:$0xf]
    %v84 = vld [vmem:[#allocation5 + $0xa4] sm:$0xf]
    %v85 = vld [vmem:[#allocation5 + $0xa8] sm:$0xf]
    %v86 = vld [vmem:[#allocation5 + $0xac] sm:$0xf]
    %v87 = vld [vmem:[#allocation5 + $0xb0] sm:$0xf]
    %v88 = vld [vmem:[#allocation5 + $0xb4] sm:$0xf]
    %v89 = vld [vmem:[#allocation5 + $0xb8] sm:$0xf]
    %v90 = vld [vmem:[#allocation5 + $0xbc] sm:$0xf]
    %v91 = vld [vmem:[#allocation5 + $0xc0] sm:$0xf]
    %v92 = vld [vmem:[#allocation5 + $0xc4] sm:$0xf]
    %v93 = vld [vmem:[#allocation5 + $0xc8] sm:$0xf]
    %v94 = vld [vmem:[#allocation5 + $0xcc] sm:$0xf]
    %v95 = vld [vmem:[#allocation5 + $0xd0] sm:$0xf]
    %v96 = vld [vmem:[#allocation5 + $0xd4] sm:$0xf]
    %v97 = vld [vmem:[#allocation5 + $0xd8] sm:$0xf]
    %v98 = vld [vmem:[#allocation5 + $0xdc] sm:$0xf]
    %v99 = vld [vmem:[#allocation5 + $0xe0] sm:$0xf]
    %v100 = vld [vmem:[#allocation5 + $0xe4] sm:$0xf]
    %v101 = vld [vmem:[#allocation5 + $0xe8] sm:$0xf]
    %v102 = vld [vmem:[#allocation5 + $0xec] sm:$0xf]
    %v103 = vld [vmem:[#allocation5 + $0xf0] sm:$0xf]
    %v104 = vld [vmem:[#allocation5 + $0xf4] sm:$0xf]
    %v105 = vld [vmem:[#allocation5 + $0xf8] sm:$0xf]
    %v106 = vld [vmem:[#allocation5 + $0xfc] sm:$0xf]
    %v107 = vld [vmem:[#allocation5 + $0x100] sm:$0xf]
    %v108 = vld [vmem:[#allocation5 + $0x104] sm:$0xf]
    %v109 = vld [vmem:[#allocation5 + $0x108] sm:$0xf]
    %v110 = vld [vmem:[#allocation5 + $0x10c] sm:$0xf]
    %v111 = vld [vmem:[#allocation5 + $0x110] sm:$0xf]
    %v112 = vld [vmem:[#allocation5 + $0x114] sm:$0xf]
    %v113 = vld [vmem:[#allocation5 + $0x118] sm:$0xf]
    %v114 = vld [vmem:[#allocation5 + $0x11c] sm:$0xf]
    %v115 = vld [vmem:[#allocation5 + $0x120] sm:$0xf]
    %v116 = vld [vmem:[#allocation5 + $0x124] sm:$0xf]
    %v117 = vld [vmem:[#allocation5 + $0x128] sm:$0xf]
    %v118 = vld [vmem:[#allocation5 + $0x12c] sm:$0xf]
    %v119 = vld [vmem:[#allocation5 + $0x130] sm:$0xf]
    %v120 = vld [vmem:[#allocation5 + $0x134] sm:$0xf]
    %v121 = vld [vmem:[#allocation5 + $0x138] sm:$0xf]
    %v122 = vld [vmem:[#allocation5 + $0x13c] sm:$0xf]
    %v123 = vld [vmem:[#allocation5 + $0x140] sm:$0xf]
    %v124 = vld [vmem:[#allocation5 + $0x144] sm:$0xf]
    %v125 = vld [vmem:[#allocation5 + $0x148] sm:$0xf]
    %v126 = vld [vmem:[#allocation5 + $0x14c] sm:$0xf]
    %v127 = vld [vmem:[#allocation5 + $0x150] sm:$0xf]
    %v128 = vld [vmem:[#allocation5 + $0x154] sm:$0xf]
    %v129 = vld [vmem:[#allocation5 + $0x158] sm:$0xf]
    %v130 = vld [vmem:[#allocation5 + $0x15c] sm:$0xf]
    %v131 = vld [vmem:[#allocation5 + $0x160] sm:$0xf]
    %v132 = vld [vmem:[#allocation5 + $0x164] sm:$0xf]
    %v133 = vld [vmem:[#allocation5 + $0x168] sm:$0xf]
    %v134 = vld [vmem:[#allocation5 + $0x16c] sm:$0xf]
    %v135 = vld [vmem:[#allocation5 + $0x170] sm:$0xf]
    %v136 = vld [vmem:[#allocation5 + $0x174] sm:$0xf]
    %v137 = vld [vmem:[#allocation5 + $0x178] sm:$0xf]
    %v138 = vld [vmem:[#allocation5 + $0x17c] sm:$0xf]
    %v139 = vld [vmem:[%s2] sm:$0x1]
    %v141 = vlaneseq
    %v142 = vshrl.u32 %v141, 7
    %v143 = vsub.s32 0, %v142
    %v144 = vrot.slane %v139, %v143
    %v147 = vcombine.high %v42, %v42
    %v149 = vunpack.c.l.s4 1966171168
    %v150 = vunpack.c.0.s8 %v149
    %v151 = vlaneseq
    %v152 = vshrl.u32 %v151, 7
    %v153 = vsub.s32 %v150, %v152
    %v154 = vrot.slane %v42, %v153
    %v156 = vunpack.c.l.s4 1966171168
    %v157 = vunpack.c.0.s8 %v156
    %v158 = vlaneseq
    %v159 = vshrl.u32 %v158, 7
    %v160 = vsub.s32 %v157, %v159
    %v161 = vrot.slane %v147, %v160
    %v162 = vcombine.high %v154, %v154
    %v163 = vcombine.high %v161, %v161
    %v165 = vunpack.c.l.s4 1966171168
    %v166 = vunpack.c.0.s8 %v165
    %v167 = vlaneseq
    %v168 = vshrl.u32 %v167, 7
    %v169 = vsub.s32 %v166, %v168
    %v170 = vrot.slane %v154, %v169
    %v172 = vunpack.c.l.s4 1966171168
    %v173 = vunpack.c.0.s8 %v172
    %v174 = vlaneseq
    %v175 = vshrl.u32 %v174, 7
    %v176 = vsub.s32 %v173, %v175
    %v177 = vrot.slane %v161, %v176
    %v179 = vunpack.c.l.s4 1966171168
    %v180 = vunpack.c.0.s8 %v179
    %v181 = vlaneseq
    %v182 = vshrl.u32 %v181, 7
    %v183 = vsub.s32 %v180, %v182
    %v184 = vrot.slane %v162, %v183
    %v186 = vunpack.c.l.s4 1966171168
    %v187 = vunpack.c.0.s8 %v186
    %v188 = vlaneseq
    %v189 = vshrl.u32 %v188, 7
    %v190 = vsub.s32 %v187, %v189
    %v191 = vrot.slane %v163, %v190
    %v192 = vcombine.high %v170, %v170
    %v193 = vcombine.high %v184, %v184
    %v296 = vunpack.c.l.b16 %v43
    %v297 = vunpack.c.l.b16 %v44
    %v298 = vunpack.c.l.b16 %v45
    %v299 = vunpack.c.l.b16 %v46
    %v300 = vunpack.c.l.b16 %v47
    %v301 = vunpack.c.l.b16 %v48
    %v302 = vunpack.c.l.b16 %v49
    %v303 = vunpack.c.l.b16 %v50
    %v304 = vunpack.c.l.b16 %v51
    %v305 = vunpack.c.l.b16 %v52
    %v306 = vunpack.c.l.b16 %v53
    %v307 = vunpack.c.l.b16 %v54
    %v308 = vunpack.c.l.b16 %v55
    %v309 = vunpack.c.l.b16 %v56
    %v310 = vunpack.c.l.b16 %v57
    %v311 = vunpack.c.l.b16 %v58
    %v312 = vunpack.c.l.b16 %v59
    %v313 = vunpack.c.l.b16 %v60
    %v314 = vunpack.c.l.b16 %v61
    %v315 = vunpack.c.l.b16 %v62
    %v316 = vunpack.c.l.b16 %v63
    %v317 = vunpack.c.l.b16 %v64
    %v318 = vunpack.c.l.b16 %v65
    %v319 = vunpack.c.l.b16 %v66
    %v320 = vunpack.c.l.b16 %v67
    %v321 = vunpack.c.l.b16 %v68
    %v322 = vunpack.c.l.b16 %v69
    %v323 = vunpack.c.l.b16 %v70
    %v324 = vunpack.c.l.b16 %v71
    %v325 = vunpack.c.l.b16 %v72
    %v326 = vunpack.c.l.b16 %v73
    %v327 = vunpack.c.l.b16 %v74
    %v328 = vunpack.c.l.b16 %v75
    %v329 = vunpack.c.l.b16 %v76
    %v330 = vunpack.c.l.b16 %v77
    %v331 = vunpack.c.l.b16 %v78
    %v332 = vunpack.c.l.b16 %v79
    %v333 = vunpack.c.l.b16 %v80
    %v334 = vunpack.c.l.b16 %v81
    %v335 = vunpack.c.l.b16 %v82
    %v336 = vunpack.c.l.b16 %v83
    %v337 = vunpack.c.l.b16 %v84
    %v338 = vunpack.c.l.b16 %v85
    %v339 = vunpack.c.l.b16 %v86
    %v340 = vunpack.c.l.b16 %v87
    %v341 = vunpack.c.l.b16 %v88
    %v342 = vunpack.c.l.b16 %v89
    %v343 = vunpack.c.l.b16 %v90
    %v344 = vunpack.c.l.b16 %v91
    %v345 = vunpack.c.l.b16 %v92
    %v346 = vunpack.c.l.b16 %v93
    %v347 = vunpack.c.l.b16 %v94
    %v348 = vunpack.c.l.b16 %v95
    %v349 = vunpack.c.l.b16 %v96
    %v350 = vunpack.c.l.b16 %v97
    %v351 = vunpack.c.l.b16 %v98
    %v352 = vunpack.c.l.b16 %v99
    %v353 = vunpack.c.l.b16 %v100
    %v354 = vunpack.c.l.b16 %v101
    %v355 = vunpack.c.l.b16 %v102
    %v356 = vunpack.c.l.b16 %v103
    %v357 = vunpack.c.l.b16 %v104
    %v358 = vunpack.c.l.b16 %v105
    %v359 = vunpack.c.l.b16 %v106
    %v360 = vunpack.c.l.b16 %v107
    %v361 = vunpack.c.l.b16 %v108
    %v362 = vunpack.c.l.b16 %v109
    %v363 = vunpack.c.l.b16 %v110
    %v364 = vunpack.c.l.b16 %v111
    %v365 = vunpack.c.l.b16 %v112
    %v366 = vunpack.c.l.b16 %v113
    %v367 = vunpack.c.l.b16 %v114
    %v368 = vunpack.c.l.b16 %v115
    %v369 = vunpack.c.l.b16 %v116
    %v370 = vunpack.c.l.b16 %v117
    %v371 = vunpack.c.l.b16 %v118
    %v372 = vunpack.c.l.b16 %v119
    %v373 = vunpack.c.l.b16 %v120
    %v374 = vunpack.c.l.b16 %v121
    %v375 = vunpack.c.l.b16 %v122
    %v376 = vunpack.c.l.b16 %v123
    %v377 = vunpack.c.l.b16 %v124
    %v378 = vunpack.c.l.b16 %v125
    %v379 = vunpack.c.l.b16 %v126
    %v380 = vunpack.c.l.b16 %v127
    %v381 = vunpack.c.l.b16 %v128
    %v382 = vunpack.c.l.b16 %v129
    %v383 = vunpack.c.l.b16 %v130
    %v384 = vunpack.c.l.b16 %v131
    %v385 = vunpack.c.l.b16 %v132
    %v386 = vunpack.c.l.b16 %v133
    %v387 = vunpack.c.l.b16 %v134
    %v388 = vunpack.c.l.b16 %v135
    %v389 = vunpack.c.l.b16 %v136
    %v390 = vunpack.c.l.b16 %v137
    %v391 = vunpack.c.l.b16 %v138
    %v392 = vpack.c.b16 %v297, %v296
    %v393 = vpack.c.b16 %v299, %v298
    %v394 = vpack.c.b16 %v301, %v300
    %v395 = vpack.c.b16 %v303, %v302
    %v396 = vpack.c.b16 %v305, %v304
    %v397 = vpack.c.b16 %v307, %v306
    %v398 = vpack.c.b16 %v309, %v308
    %v399 = vpack.c.b16 %v311, %v310
    %v400 = vpack.c.b16 %v313, %v312
    %v401 = vpack.c.b16 %v315, %v314
    %v402 = vpack.c.b16 %v317, %v316
    %v403 = vpack.c.b16 %v319, %v318
    %v404 = vpack.c.b16 %v321, %v320
    %v405 = vpack.c.b16 %v323, %v322
    %v406 = vpack.c.b16 %v325, %v324
    %v407 = vpack.c.b16 %v327, %v326
    %v408 = vpack.c.b16 %v329, %v328
    %v409 = vpack.c.b16 %v331, %v330
    %v410 = vpack.c.b16 %v333, %v332
    %v411 = vpack.c.b16 %v335, %v334
    %v412 = vpack.c.b16 %v337, %v336
    %v413 = vpack.c.b16 %v339, %v338
    %v414 = vpack.c.b16 %v341, %v340
    %v415 = vpack.c.b16 %v343, %v342
    %v416 = vpack.c.b16 %v345, %v344
    %v417 = vpack.c.b16 %v347, %v346
    %v418 = vpack.c.b16 %v349, %v348
    %v419 = vpack.c.b16 %v351, %v350
    %v420 = vpack.c.b16 %v353, %v352
    %v421 = vpack.c.b16 %v355, %v354
    %v422 = vpack.c.b16 %v357, %v356
    %v423 = vpack.c.b16 %v359, %v358
    %v424 = vpack.c.b16 %v361, %v360
    %v425 = vpack.c.b16 %v363, %v362
    %v426 = vpack.c.b16 %v365, %v364
    %v427 = vpack.c.b16 %v367, %v366
    %v428 = vpack.c.b16 %v369, %v368
    %v429 = vpack.c.b16 %v371, %v370
    %v430 = vpack.c.b16 %v373, %v372
    %v431 = vpack.c.b16 %v375, %v374
    %v432 = vpack.c.b16 %v377, %v376
    %v433 = vpack.c.b16 %v379, %v378
    %v434 = vpack.c.b16 %v381, %v380
    %v435 = vpack.c.b16 %v383, %v382
    %v436 = vpack.c.b16 %v385, %v384
    %v437 = vpack.c.b16 %v387, %v386
    %v438 = vpack.c.b16 %v389, %v388
    %v439 = vpack.c.b16 %v391, %v390
    %488 = vmatprep.subr.bf16.mxu0 0
    %489 = vmatpush1.bf16.msra.mxu0 %v399
    %490 = vmatprep.subr.bf16.mxu0 0
    %491 = vmatpush1.bf16.msra.mxu0 %v398
    %492 = vmatprep.subr.bf16.mxu0 0
    %493 = vmatpush1.bf16.msra.mxu0 %v397
    %494 = vmatprep.subr.bf16.mxu0 0
    %495 = vmatpush1.bf16.msra.mxu0 %v396
    %496 = vmatprep.subr.bf16.mxu0 0
    %497 = vmatpush1.bf16.msra.mxu0 %v395
    %498 = vmatprep.subr.bf16.mxu0 0
    %499 = vmatpush1.bf16.msra.mxu0 %v394
    %500 = vmatprep.subr.bf16.mxu0 0
    %501 = vmatpush1.bf16.msra.mxu0 %v393
    %502 = vmatprep.subr.bf16.mxu0 0
    %503 = vmatpush1.bf16.msra.mxu0 %v392
    %504 = vmatprep.subr.bf16.mxu0 0
    %505 = vmatpush2.bf16.msra.mxu0 %v407
    %506 = vmatprep.subr.bf16.mxu0 0
    %507 = vmatpush2.bf16.msra.mxu0 %v406
    %508 = vmatprep.subr.bf16.mxu0 0
    %509 = vmatpush2.bf16.msra.mxu0 %v405
    %510 = vmatprep.subr.bf16.mxu0 0
    %511 = vmatpush2.bf16.msra.mxu0 %v404
    %512 = vmatprep.subr.bf16.mxu0 0
    %513 = vmatpush2.bf16.msra.mxu0 %v403
    %514 = vmatprep.subr.bf16.mxu0 0
    %515 = vmatpush2.bf16.msra.mxu0 %v402
    %516 = vmatprep.subr.bf16.mxu0 0
    %517 = vmatpush2.bf16.msra.mxu0 %v401
    %518 = vmatprep.subr.bf16.mxu0 0
    %519 = vmatpush2.bf16.msra.mxu0 %v400
    %520 = vmatprep.mubr.bf16.mxu0 %v184
    %521 = vmatmul.mubr.bf16.gmra.mxu0 %v170
    %v522 = vpop.f32.mrf.mxu0
    %v523 = vadd.f32 %v144, %v522
    %v524 = vpop.f32.mrf.mxu0
    %v525 = vpop.f32.mrf.mxu0
    %v526 = vpop.f32.mrf.mxu0
    %527 = vdwg.mxu0
    %528 = vmatprep.subr.bf16.mxu0 0
    %529 = vmatpush1.bf16.msra.mxu0 %v415
    %530 = vmatprep.subr.bf16.mxu0 0
    %531 = vmatpush1.bf16.msra.mxu0 %v414
    %532 = vmatprep.subr.bf16.mxu0 0
    %533 = vmatpush1.bf16.msra.mxu0 %v413
    %534 = vmatprep.subr.bf16.mxu0 0
    %535 = vmatpush1.bf16.msra.mxu0 %v412
    %536 = vmatprep.subr.bf16.mxu0 0
    %537 = vmatpush1.bf16.msra.mxu0 %v411
    %538 = vmatprep.subr.bf16.mxu0 0
    %539 = vmatpush1.bf16.msra.mxu0 %v410
    %540 = vmatprep.subr.bf16.mxu0 0
    %541 = vmatpush1.bf16.msra.mxu0 %v409
    %542 = vmatprep.subr.bf16.mxu0 0
    %543 = vmatpush1.bf16.msra.mxu0 %v408
    %544 = vmatprep.subr.bf16.mxu0 0
    %545 = vmatpush2.bf16.msra.mxu0 %v423
    %546 = vmatprep.subr.bf16.mxu0 0
    %547 = vmatpush2.bf16.msra.mxu0 %v422
    %548 = vmatprep.subr.bf16.mxu0 0
    %549 = vmatpush2.bf16.msra.mxu0 %v421
    %550 = vmatprep.subr.bf16.mxu0 0
    %551 = vmatpush2.bf16.msra.mxu0 %v420
    %552 = vmatprep.subr.bf16.mxu0 0
    %553 = vmatpush2.bf16.msra.mxu0 %v419
    %554 = vmatprep.subr.bf16.mxu0 0
    %555 = vmatpush2.bf16.msra.mxu0 %v418
    %556 = vmatprep.subr.bf16.mxu0 0
    %557 = vmatpush2.bf16.msra.mxu0 %v417
    %558 = vmatprep.subr.bf16.mxu0 0
    %559 = vmatpush2.bf16.msra.mxu0 %v416
    %560 = vmatprep.mubr.bf16.mxu0 %v193
    %561 = vmatmul.mubr.bf16.gmra.mxu0 %v192
    %v562 = vpop.f32.mrf.mxu0
    %v563 = vadd.f32 %v523, %v562
    %v564 = vpop.f32.mrf.mxu0
    %v565 = vpop.f32.mrf.mxu0
    %v566 = vpop.f32.mrf.mxu0
    %567 = vdwg.mxu0
    %568 = vmatprep.subr.bf16.mxu0 0
    %569 = vmatpush1.bf16.msra.mxu0 %v431
    %570 = vmatprep.subr.bf16.mxu0 0
    %571 = vmatpush1.bf16.msra.mxu0 %v430
    %572 = vmatprep.subr.bf16.mxu0 0
    %573 = vmatpush1.bf16.msra.mxu0 %v429
    %574 = vmatprep.subr.bf16.mxu0 0
    %575 = vmatpush1.bf16.msra.mxu0 %v428
    %576 = vmatprep.subr.bf16.mxu0 0
    %577 = vmatpush1.bf16.msra.mxu0 %v427
    %578 = vmatprep.subr.bf16.mxu0 0
    %579 = vmatpush1.bf16.msra.mxu0 %v426
    %580 = vmatprep.subr.bf16.mxu0 0
    %581 = vmatpush1.bf16.msra.mxu0 %v425
    %582 = vmatprep.subr.bf16.mxu0 0
    %583 = vmatpush1.bf16.msra.mxu0 %v424
    %584 = vmatprep.subr.bf16.mxu0 0
    %585 = vmatpush2.bf16.msra.mxu0 %v439
    %586 = vmatprep.subr.bf16.mxu0 0
    %587 = vmatpush2.bf16.msra.mxu0 %v438
    %588 = vmatprep.subr.bf16.mxu0 0
    %589 = vmatpush2.bf16.msra.mxu0 %v437
    %590 = vmatprep.subr.bf16.mxu0 0
    %591 = vmatpush2.bf16.msra.mxu0 %v436
    %592 = vmatprep.subr.bf16.mxu0 0
    %593 = vmatpush2.bf16.msra.mxu0 %v435
    %594 = vmatprep.subr.bf16.mxu0 0
    %595 = vmatpush2.bf16.msra.mxu0 %v434
    %596 = vmatprep.subr.bf16.mxu0 0
    %597 = vmatpush2.bf16.msra.mxu0 %v433
    %598 = vmatprep.subr.bf16.mxu0 0
    %599 = vmatpush2.bf16.msra.mxu0 %v432
    %600 = vmatprep.mubr.bf16.mxu0 %v191
    %601 = vmatmul.mubr.bf16.gmra.mxu0 %v177
    %v602 = vpop.f32.mrf.mxu0
    %v603 = vadd.f32 %v563, %v602
    %v604 = vpop.f32.mrf.mxu0
    %v605 = vpop.f32.mrf.mxu0
    %v606 = vpop.f32.mrf.mxu0
    %607 = vdwg.mxu0
    %608 = vst [vmem:[#allocation7] sm:$0x3] %v603
    // Predicated region
    $region22: #{tpu_custom_call.1} parent=1 // pred_check
      _
    $region23: #{tpu_custom_call.1} parent=1 // pred_check_branch
      %610 = sbr.rel (0) target = $region25
    $region24: #{tpu_custom_call.1} parent=1 // pred_region
      %s612 = ssub.s32 32, 32
      %613 = vsyncadd [#allocation4], %s612
      %s615 = sshll.u32 [#allocation7], 4
      %s616 = int_to_ptr.vmem [resolvable:$true] %s615
      %618 = dma.vmem_to_hbm [thread:$0]  %s616, 32, %s3, [#allocation4]
    $region25: #{tpu_custom_call.1} parent=1 // pred_fallthru
      _
    // Predicated region
    $region26: #{tpu_custom_call.1} parent=1 // pred_check
      _
    $region27: #{tpu_custom_call.1} parent=1 // pred_check_branch
      %620 = sbr.rel (0) target = $region29
    $region28: #{tpu_custom_call.1} parent=1 // pred_region
      %621 = dma.done [#allocation4], 32
    $region29: #{tpu_custom_call.1} parent=1 // pred_fallthru
      _
    %622 = vsyncpa [#allocation3], 1
    %623 = vsyncpa [#allocation6], 1
    %624 = vsyncpa [#allocation4], 1

</llo_original>
